<compile_context>
chip_gen: v5e
topology: v5e:2x2
jax: 0.10.0
libtpu: 0.0.40
codegen_flags: <defaults>
</compile_context>

<pallas_src>
import functools

import jax
import jax.numpy as jnp
from jax.experimental import pallas as pl
from jax.experimental.pallas import tpu as pltpu


def _spatial_attention_kernel(x_ref, m_ref, r_ref, o_ref, sum_acc, max_acc,
                              *, inv_c, ks):
    # x_ref  : (1, c_tile, H, W)  one channel-tile of one batch element
    # m_ref  : (ks, 2, W, W)      per-row-tap column band matrices (c=0 avg, c=1 max)
    # r_ref  : (ks, H, H)         0/1 row-shift matrices
    # o_ref  : (1, H, W)          sigmoid attention map for this batch element
    # sum_acc, max_acc : (H, W) f32 scratch accumulators (persist across k steps)
    k = pl.program_id(1)
    nk = pl.num_programs(1)

    @pl.when(k == 0)
    def _init():
        sum_acc[...] = jnp.zeros(sum_acc.shape, sum_acc.dtype)
        max_acc[...] = jnp.full(max_acc.shape, -jnp.inf, max_acc.dtype)

    # Stream this channel tile; accumulate in f32 regardless of input dtype.
    x = x_ref[0].astype(jnp.float32)                      # (c_tile, H, W)
    sum_acc[...] = sum_acc[...] + jnp.sum(x, axis=0)      # leading-axis reduce: pure VALU
    max_acc[...] = jnp.maximum(max_acc[...], jnp.max(x, axis=0))

    @pl.when(k == nk - 1)
    def _finalize():
        avg = sum_acc[...] * inv_c                        # (H, W)  channel mean
        mx = max_acc[...]                                 # (H, W)  channel max

        # 7x7 conv over the 2-channel [avg; max] map as banded matmuls.
        logits = jnp.zeros(avg.shape, jnp.float32)
        for kh in range(ks):                              # unrolled (ks == 7)
            t = (jnp.dot(avg, m_ref[kh, 0], preferred_element_type=jnp.float32)
                 + jnp.dot(mx, m_ref[kh, 1], preferred_element_type=jnp.float32))
            logits = logits + jnp.dot(r_ref[kh], t,
                                      preferred_element_type=jnp.float32)

        # sigmoid(x) = 1 / (1 + exp(-x)); exp on EUP, divide via pl.reciprocal.
        sig = pl.reciprocal(1.0 + jnp.exp(-logits))
        o_ref[0] = sig.astype(o_ref.dtype)


def _conv_as_banded_matrices(conv_weight, H, W):
    """Turn a (1, 2, KS, KS) conv weight into (KS, 2, W, W) band matrices M and
    (KS, H, H) row-shift matrices R such that
      conv2d([avg;max], w, padding=KS//2) == sum_kh R[kh] @ (avg@M[kh,0] + max@M[kh,1]).
    """
    ks = conv_weight.shape[-1]
    p = ks // 2
    wt = conv_weight.reshape(2, ks, ks).astype(jnp.float32)     # (c, kh, kw)

    i = jnp.arange(W)[:, None]                 # input column
    j = jnp.arange(W)[None, :]                 # output column
    kw_idx = i - j + p                         # (W, W)
    valid = (kw_idx >= 0) & (kw_idx < ks)
    kw_safe = jnp.clip(kw_idx, 0, ks - 1)
    wt_t = wt.transpose(1, 0, 2)               # (kh, c, kw)
    m = wt_t[:, :, kw_safe]                    # (ks, 2, W, W)
    m = jnp.where(valid[None, None], m, 0.0)

    h_out = jnp.arange(H)[:, None]
    h_in = jnp.arange(H)[None, :]
    kh = jnp.arange(ks)[:, None, None]
    r = (h_in[None] == (h_out[None] + kh - p)).astype(jnp.float32)   # (ks, H, H)
    return m, r


def _round_up(a, b):
    return (a + b - 1) // b * b


def spatial_attention(x, conv_weight, *, c_tile=None):
    """x: (B, C, H, W); conv_weight: (1, 2, KS, KS) (Conv2d(2,1,KS,pad=KS//2,bias=False)).
    Returns (B, 1, H, W) sigmoid spatial-attention map (PyTorch SpatialAttention)."""
    B, C, H, W = x.shape
    ks = conv_weight.shape[-1]
    m_mats, r_mats = _conv_as_banded_matrices(conv_weight, H, W)

    if c_tile is None:
        # Budget ~4 MiB per x block (x2 double buffering = 8 MiB) counting the
        # (8,128) VMEM tile padding, so it fits every generation's default
        # scoped VMEM (v5e 16 MiB / v6e 32 MiB / v7x 32 MiB of 64 MiB physical).
        bytes_per_slab = _round_up(H, 8) * _round_up(W, 128) * x.dtype.itemsize
        max_tc = max(1, (4 * 1024 * 1024) // bytes_per_slab)
        c_tile = 1
        for d in range(1, C + 1):
            if C % d == 0 and d <= max_tc:
                c_tile = d
    assert C % c_tile == 0, "c_tile must divide C"

    grid = (B, C // c_tile)
    kernel = functools.partial(_spatial_attention_kernel, inv_c=1.0 / C, ks=ks)

    out = pl.pallas_call(
        kernel,
        out_shape=jax.ShapeDtypeStruct((B, H, W), jnp.float32),
        grid=grid,
        in_specs=[
            # Channel tiles of x: double-buffered streaming over the reduce axis.
            pl.BlockSpec((1, c_tile, H, W), lambda b, k: (b, k, 0, 0)),
            # Small conv-derived matrices: resident, same block every step.
            pl.BlockSpec((ks, 2, W, W), lambda b, k: (0, 0, 0, 0)),
            pl.BlockSpec((ks, H, H), lambda b, k: (0, 0, 0)),
        ],
        out_specs=pl.BlockSpec((1, H, W), lambda b, k: (b, 0, 0)),
        scratch_shapes=[
            pltpu.VMEM((H, W), jnp.float32),   # running channel sum
            pltpu.VMEM((H, W), jnp.float32),   # running channel max
        ],
        compiler_params=pltpu.CompilerParams(
            dimension_semantics=("parallel", "arbitrary")),
    )(x, m_mats, r_mats)

    return out.reshape(B, 1, H, W)


def _reference(x, conv_weight):
    """Plain-JAX reference mirroring the PyTorch forward (tap-by-tap, exact f32)."""
    B, C, H, W = x.shape
    ks = conv_weight.shape[-1]
    p = ks // 2
    avg = jnp.mean(x, axis=1)
    mx = jnp.max(x, axis=1)
    stacked = jnp.stack([avg, mx], axis=1)                     # (B, 2, H, W)
    padded = jnp.pad(stacked, ((0, 0), (0, 0), (p, p), (p, p)))
    wt = conv_weight.reshape(2, ks, ks)
    out = jnp.zeros((B, H, W), jnp.float32)
    for c in range(2):
        for kh in range(ks):
            for kw in range(ks):
                out = out + wt[c, kh, kw] * padded[:, c, kh:kh + H, kw:kw + W]
    return jax.nn.sigmoid(out)[:, None]                        # (B, 1, H, W)


if __name__ == "__main__":
    B, C, H, W = 2, 64, 16, 16
    KS = 7

    key = jax.random.PRNGKey(0)
    kx, kw = jax.random.split(key)
    x = jax.random.normal(kx, (B, C, H, W), dtype=jnp.float32)
    # Conv2d(2, 1, 7, padding=3, bias=False) weight.
    conv_weight = jax.random.normal(kw, (1, 2, KS, KS), dtype=jnp.float32) * 0.1

    # c_tile=16 -> grid=(B, 4): exercises the streamed, double-buffered reduction.
    out = spatial_attention(x, conv_weight, c_tile=16)
    out = jax.block_until_ready(out)

    ref = _reference(x, conv_weight)
    assert out.shape == (B, 1, H, W)
    max_err = float(jnp.max(jnp.abs(out - ref)))
    # Tolerance leaves headroom for MXU rounding of the small conv matmuls.
    assert max_err < 2e-3, f"max abs error {max_err}"

    print("KERNEL_OK")
</pallas_src>

<mosaic_0001>
module attributes {stable_mosaic.version = 11 : i64} {
  func.func @_spatial_attention_kernel(%arg0: i32, %arg1: i32, %arg2: memref<1x16x16x16xf32, #tpu.memory_space<vmem>>, %arg3: memref<7x2x16x16xf32, #tpu.memory_space<vmem>>, %arg4: memref<7x16x16xf32, #tpu.memory_space<vmem>>, %arg5: memref<1x16x16xf32, #tpu.memory_space<vmem>>, %arg6: memref<16x16xf32, #tpu.memory_space<vmem>>, %arg7: memref<16x16xf32, #tpu.memory_space<vmem>>) attributes {dimension_semantics = [#tpu.dimension_semantics<parallel>, #tpu.dimension_semantics<arbitrary>], iteration_bounds = array<i64: 2, 4>, scalar_prefetch = 0 : i64, scratch_operands = 2 : i64, tpu.core_type = #tpu.core_type<tc>, window_params = [{transform_indices = @transform_0, window_bounds = array<i64: 1, 16, 16, 16>}, {pipeline_mode = #tpu.pipeline_mode<synchronous>, transform_indices = @transform_1, window_bounds = array<i64: 7, 2, 16, 16>}, {pipeline_mode = #tpu.pipeline_mode<synchronous>, transform_indices = @transform_2, window_bounds = array<i64: 7, 16, 16>}, {transform_indices = @transform_3, window_bounds = array<i64: 1, 16, 16>}]} {
    %c0_i32 = arith.constant 0 : i32
    %0 = arith.cmpi eq, %arg1, %c0_i32 : i32
    %1 = arith.extui %0 : i1 to i32
    %c0_i32_0 = arith.constant 0 : i32
    %2 = arith.cmpi ne, %1, %c0_i32_0 : i32
    scf.if %2 {
      %cst_14 = arith.constant 0.000000e+00 : f32
      %16 = vector.broadcast %cst_14 : f32 to vector<16x16xf32>
      %c0_15 = arith.constant 0 : index
      %c0_16 = arith.constant 0 : index
      %17 = vector.load %arg6[%c0_15, %c0_16] : memref<16x16xf32, #tpu.memory_space<vmem>>, vector<16x16xf32>
      tpu.vector_store %arg6[%c0_15, %c0_16], %16 {strides = array<i32>} : memref<16x16xf32, #tpu.memory_space<vmem>>, vector<16x16xf32>,
      %cst_17 = arith.constant 0xFF800000 : f32
      %18 = vector.broadcast %cst_17 : f32 to vector<16x16xf32>
      %c0_18 = arith.constant 0 : index
      %c0_19 = arith.constant 0 : index
      %19 = vector.load %arg7[%c0_18, %c0_19] : memref<16x16xf32, #tpu.memory_space<vmem>>, vector<16x16xf32>
      tpu.vector_store %arg7[%c0_18, %c0_19], %18 {strides = array<i32>} : memref<16x16xf32, #tpu.memory_space<vmem>>, vector<16x16xf32>,
    } else {
    }
    %c0 = arith.constant 0 : index
    %c0_1 = arith.constant 0 : index
    %c0_2 = arith.constant 0 : index
    %c0_3 = arith.constant 0 : index
    %3 = vector.load %arg2[%c0, %c0_1, %c0_2, %c0_3] : memref<1x16x16x16xf32, #tpu.memory_space<vmem>>, vector<1x16x16x16xf32>
    %4 = vector.shape_cast %3 : vector<1x16x16x16xf32> to vector<16x16x16xf32>
    %c0_4 = arith.constant 0 : index
    %c0_5 = arith.constant 0 : index
    %5 = vector.load %arg6[%c0_4, %c0_5] : memref<16x16xf32, #tpu.memory_space<vmem>>, vector<16x16xf32>
    %cst = arith.constant dense<0.000000e+00> : vector<16x16xf32>
    %6 = vector.multi_reduction <add>, %4, %cst [0] : vector<16x16x16xf32> to vector<16x16xf32>
    %7 = arith.addf %5, %6 : vector<16x16xf32>
    %c0_6 = arith.constant 0 : index
    %c0_7 = arith.constant 0 : index
    %8 = vector.load %arg6[%c0_6, %c0_7] : memref<16x16xf32, #tpu.memory_space<vmem>>, vector<16x16xf32>
    tpu.vector_store %arg6[%c0_6, %c0_7], %7 {strides = array<i32>} : memref<16x16xf32, #tpu.memory_space<vmem>>, vector<16x16xf32>,
    %c0_8 = arith.constant 0 : index
    %c0_9 = arith.constant 0 : index
    %9 = vector.load %arg7[%c0_8, %c0_9] : memref<16x16xf32, #tpu.memory_space<vmem>>, vector<16x16xf32>
    %cst_10 = arith.constant dense<0xFF800000> : vector<16x16xf32>
    %10 = vector.multi_reduction <maximumf>, %4, %cst_10 [0] : vector<16x16x16xf32> to vector<16x16xf32>
    %11 = arith.maximumf %9, %10 : vector<16x16xf32>
    %c0_11 = arith.constant 0 : index
    %c0_12 = arith.constant 0 : index
    %12 = vector.load %arg7[%c0_11, %c0_12] : memref<16x16xf32, #tpu.memory_space<vmem>>, vector<16x16xf32>
    tpu.vector_store %arg7[%c0_11, %c0_12], %11 {strides = array<i32>} : memref<16x16xf32, #tpu.memory_space<vmem>>, vector<16x16xf32>,
    %c3_i32 = arith.constant 3 : i32
    %13 = arith.cmpi eq, %arg1, %c3_i32 : i32
    %14 = arith.extui %13 : i1 to i32
    %c0_i32_13 = arith.constant 0 : i32
    %15 = arith.cmpi ne, %14, %c0_i32_13 : i32
    scf.if %15 {
      %c0_14 = arith.constant 0 : index
      %c0_15 = arith.constant 0 : index
      %16 = vector.load %arg6[%c0_14, %c0_15] : memref<16x16xf32, #tpu.memory_space<vmem>>, vector<16x16xf32>
      %cst_16 = arith.constant 1.562500e-02 : f32
      %17 = vector.broadcast %cst_16 : f32 to vector<16x16xf32>
      %18 = arith.mulf %16, %17 : vector<16x16xf32>
      %c0_17 = arith.constant 0 : index
      %c0_18 = arith.constant 0 : index
      %19 = vector.load %arg7[%c0_17, %c0_18] : memref<16x16xf32, #tpu.memory_space<vmem>>, vector<16x16xf32>
      %cst_19 = arith.constant 0.000000e+00 : f32
      %20 = vector.broadcast %cst_19 : f32 to vector<16x16xf32>
      %c0_20 = arith.constant 0 : index
      %c0_21 = arith.constant 0 : index
      %c0_22 = arith.constant 0 : index
      %c0_23 = arith.constant 0 : index
      %21 = vector.load %arg3[%c0_20, %c0_21, %c0_22, %c0_23] : memref<7x2x16x16xf32, #tpu.memory_space<vmem>>, vector<1x1x16x16xf32>
      %22 = vector.shape_cast %21 : vector<1x1x16x16xf32> to vector<16x16xf32>
      %cst_24 = arith.constant dense<0.000000e+00> : vector<16x16xf32>
      %23 = tpu.matmul %18, %22, %cst_24 {dimension_numbers = #tpu.dot_dimension_numbers<[1], [0], [0], [1], [0, 0, 1, 1], [], []>} : vector<16x16xf32>, vector<16x16xf32>, vector<16x16xf32> -> vector<16x16xf32>
      %c0_25 = arith.constant 0 : index
      %c1 = arith.constant 1 : index
      %c0_26 = arith.constant 0 : index
      %c0_27 = arith.constant 0 : index
      %24 = vector.load %arg3[%c0_25, %c1, %c0_26, %c0_27] : memref<7x2x16x16xf32, #tpu.memory_space<vmem>>, vector<1x1x16x16xf32>
      %25 = vector.shape_cast %24 : vector<1x1x16x16xf32> to vector<16x16xf32>
      %cst_28 = arith.constant dense<0.000000e+00> : vector<16x16xf32>
      %26 = tpu.matmul %19, %25, %cst_28 {dimension_numbers = #tpu.dot_dimension_numbers<[1], [0], [0], [1], [0, 0, 1, 1], [], []>} : vector<16x16xf32>, vector<16x16xf32>, vector<16x16xf32> -> vector<16x16xf32>
      %27 = arith.addf %23, %26 : vector<16x16xf32>
      %c0_29 = arith.constant 0 : index
      %c0_30 = arith.constant 0 : index
      %c0_31 = arith.constant 0 : index
      %28 = vector.load %arg4[%c0_29, %c0_30, %c0_31] : memref<7x16x16xf32, #tpu.memory_space<vmem>>, vector<1x16x16xf32>
      %29 = vector.shape_cast %28 : vector<1x16x16xf32> to vector<16x16xf32>
      %cst_32 = arith.constant dense<0.000000e+00> : vector<16x16xf32>
      %30 = tpu.matmul %29, %27, %cst_32 {dimension_numbers = #tpu.dot_dimension_numbers<[1], [0], [0], [1], [0, 0, 1, 1], [], []>} : vector<16x16xf32>, vector<16x16xf32>, vector<16x16xf32> -> vector<16x16xf32>
      %31 = arith.addf %20, %30 : vector<16x16xf32>
      %c1_33 = arith.constant 1 : index
      %c0_34 = arith.constant 0 : index
      %c0_35 = arith.constant 0 : index
      %c0_36 = arith.constant 0 : index
      %32 = vector.load %arg3[%c1_33, %c0_34, %c0_35, %c0_36] : memref<7x2x16x16xf32, #tpu.memory_space<vmem>>, vector<1x1x16x16xf32>
      %33 = vector.shape_cast %32 : vector<1x1x16x16xf32> to vector<16x16xf32>
      %cst_37 = arith.constant dense<0.000000e+00> : vector<16x16xf32>
      %34 = tpu.matmul %18, %33, %cst_37 {dimension_numbers = #tpu.dot_dimension_numbers<[1], [0], [0], [1], [0, 0, 1, 1], [], []>} : vector<16x16xf32>, vector<16x16xf32>, vector<16x16xf32> -> vector<16x16xf32>
      %c1_38 = arith.constant 1 : index
      %c1_39 = arith.constant 1 : index
      %c0_40 = arith.constant 0 : index
      %c0_41 = arith.constant 0 : index
      %35 = vector.load %arg3[%c1_38, %c1_39, %c0_40, %c0_41] : memref<7x2x16x16xf32, #tpu.memory_space<vmem>>, vector<1x1x16x16xf32>
      %36 = vector.shape_cast %35 : vector<1x1x16x16xf32> to vector<16x16xf32>
      %cst_42 = arith.constant dense<0.000000e+00> : vector<16x16xf32>
      %37 = tpu.matmul %19, %36, %cst_42 {dimension_numbers = #tpu.dot_dimension_numbers<[1], [0], [0], [1], [0, 0, 1, 1], [], []>} : vector<16x16xf32>, vector<16x16xf32>, vector<16x16xf32> -> vector<16x16xf32>
      %38 = arith.addf %34, %37 : vector<16x16xf32>
      %c1_43 = arith.constant 1 : index
      %c0_44 = arith.constant 0 : index
      %c0_45 = arith.constant 0 : index
      %39 = vector.load %arg4[%c1_43, %c0_44, %c0_45] : memref<7x16x16xf32, #tpu.memory_space<vmem>>, vector<1x16x16xf32>
      %40 = vector.shape_cast %39 : vector<1x16x16xf32> to vector<16x16xf32>
      %cst_46 = arith.constant dense<0.000000e+00> : vector<16x16xf32>
      %41 = tpu.matmul %40, %38, %cst_46 {dimension_numbers = #tpu.dot_dimension_numbers<[1], [0], [0], [1], [0, 0, 1, 1], [], []>} : vector<16x16xf32>, vector<16x16xf32>, vector<16x16xf32> -> vector<16x16xf32>
      %42 = arith.addf %31, %41 : vector<16x16xf32>
      %c2 = arith.constant 2 : index
      %c0_47 = arith.constant 0 : index
      %c0_48 = arith.constant 0 : index
      %c0_49 = arith.constant 0 : index
      %43 = vector.load %arg3[%c2, %c0_47, %c0_48, %c0_49] : memref<7x2x16x16xf32, #tpu.memory_space<vmem>>, vector<1x1x16x16xf32>
      %44 = vector.shape_cast %43 : vector<1x1x16x16xf32> to vector<16x16xf32>
      %cst_50 = arith.constant dense<0.000000e+00> : vector<16x16xf32>
      %45 = tpu.matmul %18, %44, %cst_50 {dimension_numbers = #tpu.dot_dimension_numbers<[1], [0], [0], [1], [0, 0, 1, 1], [], []>} : vector<16x16xf32>, vector<16x16xf32>, vector<16x16xf32> -> vector<16x16xf32>
      %c2_51 = arith.constant 2 : index
      %c1_52 = arith.constant 1 : index
      %c0_53 = arith.constant 0 : index
      %c0_54 = arith.constant 0 : index
      %46 = vector.load %arg3[%c2_51, %c1_52, %c0_53, %c0_54] : memref<7x2x16x16xf32, #tpu.memory_space<vmem>>, vector<1x1x16x16xf32>
      %47 = vector.shape_cast %46 : vector<1x1x16x16xf32> to vector<16x16xf32>
      %cst_55 = arith.constant dense<0.000000e+00> : vector<16x16xf32>
      %48 = tpu.matmul %19, %47, %cst_55 {dimension_numbers = #tpu.dot_dimension_numbers<[1], [0], [0], [1], [0, 0, 1, 1], [], []>} : vector<16x16xf32>, vector<16x16xf32>, vector<16x16xf32> -> vector<16x16xf32>
      %49 = arith.addf %45, %48 : vector<16x16xf32>
      %c2_56 = arith.constant 2 : index
      %c0_57 = arith.constant 0 : index
      %c0_58 = arith.constant 0 : index
      %50 = vector.load %arg4[%c2_56, %c0_57, %c0_58] : memref<7x16x16xf32, #tpu.memory_space<vmem>>, vector<1x16x16xf32>
      %51 = vector.shape_cast %50 : vector<1x16x16xf32> to vector<16x16xf32>
      %cst_59 = arith.constant dense<0.000000e+00> : vector<16x16xf32>
      %52 = tpu.matmul %51, %49, %cst_59 {dimension_numbers = #tpu.dot_dimension_numbers<[1], [0], [0], [1], [0, 0, 1, 1], [], []>} : vector<16x16xf32>, vector<16x16xf32>, vector<16x16xf32> -> vector<16x16xf32>
      %53 = arith.addf %42, %52 : vector<16x16xf32>
      %c3 = arith.constant 3 : index
      %c0_60 = arith.constant 0 : index
      %c0_61 = arith.constant 0 : index
      %c0_62 = arith.constant 0 : index
      %54 = vector.load %arg3[%c3, %c0_60, %c0_61, %c0_62] : memref<7x2x16x16xf32, #tpu.memory_space<vmem>>, vector<1x1x16x16xf32>
      %55 = vector.shape_cast %54 : vector<1x1x16x16xf32> to vector<16x16xf32>
      %cst_63 = arith.constant dense<0.000000e+00> : vector<16x16xf32>
      %56 = tpu.matmul %18, %55, %cst_63 {dimension_numbers = #tpu.dot_dimension_numbers<[1], [0], [0], [1], [0, 0, 1, 1], [], []>} : vector<16x16xf32>, vector<16x16xf32>, vector<16x16xf32> -> vector<16x16xf32>
      %c3_64 = arith.constant 3 : index
      %c1_65 = arith.constant 1 : index
      %c0_66 = arith.constant 0 : index
      %c0_67 = arith.constant 0 : index
      %57 = vector.load %arg3[%c3_64, %c1_65, %c0_66, %c0_67] : memref<7x2x16x16xf32, #tpu.memory_space<vmem>>, vector<1x1x16x16xf32>
      %58 = vector.shape_cast %57 : vector<1x1x16x16xf32> to vector<16x16xf32>
      %cst_68 = arith.constant dense<0.000000e+00> : vector<16x16xf32>
      %59 = tpu.matmul %19, %58, %cst_68 {dimension_numbers = #tpu.dot_dimension_numbers<[1], [0], [0], [1], [0, 0, 1, 1], [], []>} : vector<16x16xf32>, vector<16x16xf32>, vector<16x16xf32> -> vector<16x16xf32>
      %60 = arith.addf %56, %59 : vector<16x16xf32>
      %c3_69 = arith.constant 3 : index
      %c0_70 = arith.constant 0 : index
      %c0_71 = arith.constant 0 : index
      %61 = vector.load %arg4[%c3_69, %c0_70, %c0_71] : memref<7x16x16xf32, #tpu.memory_space<vmem>>, vector<1x16x16xf32>
      %62 = vector.shape_cast %61 : vector<1x16x16xf32> to vector<16x16xf32>
      %cst_72 = arith.constant dense<0.000000e+00> : vector<16x16xf32>
      %63 = tpu.matmul %62, %60, %cst_72 {dimension_numbers = #tpu.dot_dimension_numbers<[1], [0], [0], [1], [0, 0, 1, 1], [], []>} : vector<16x16xf32>, vector<16x16xf32>, vector<16x16xf32> -> vector<16x16xf32>
      %64 = arith.addf %53, %63 : vector<16x16xf32>
      %c4 = arith.constant 4 : index
      %c0_73 = arith.constant 0 : index
      %c0_74 = arith.constant 0 : index
      %c0_75 = arith.constant 0 : index
      %65 = vector.load %arg3[%c4, %c0_73, %c0_74, %c0_75] : memref<7x2x16x16xf32, #tpu.memory_space<vmem>>, vector<1x1x16x16xf32>
      %66 = vector.shape_cast %65 : vector<1x1x16x16xf32> to vector<16x16xf32>
      %cst_76 = arith.constant dense<0.000000e+00> : vector<16x16xf32>
      %67 = tpu.matmul %18, %66, %cst_76 {dimension_numbers = #tpu.dot_dimension_numbers<[1], [0], [0], [1], [0, 0, 1, 1], [], []>} : vector<16x16xf32>, vector<16x16xf32>, vector<16x16xf32> -> vector<16x16xf32>
      %c4_77 = arith.constant 4 : index
      %c1_78 = arith.constant 1 : index
      %c0_79 = arith.constant 0 : index
      %c0_80 = arith.constant 0 : index
      %68 = vector.load %arg3[%c4_77, %c1_78, %c0_79, %c0_80] : memref<7x2x16x16xf32, #tpu.memory_space<vmem>>, vector<1x1x16x16xf32>
      %69 = vector.shape_cast %68 : vector<1x1x16x16xf32> to vector<16x16xf32>
      %cst_81 = arith.constant dense<0.000000e+00> : vector<16x16xf32>
      %70 = tpu.matmul %19, %69, %cst_81 {dimension_numbers = #tpu.dot_dimension_numbers<[1], [0], [0], [1], [0, 0, 1, 1], [], []>} : vector<16x16xf32>, vector<16x16xf32>, vector<16x16xf32> -> vector<16x16xf32>
      %71 = arith.addf %67, %70 : vector<16x16xf32>
      %c4_82 = arith.constant 4 : index
      %c0_83 = arith.constant 0 : index
      %c0_84 = arith.constant 0 : index
      %72 = vector.load %arg4[%c4_82, %c0_83, %c0_84] : memref<7x16x16xf32, #tpu.memory_space<vmem>>, vector<1x16x16xf32>
      %73 = vector.shape_cast %72 : vector<1x16x16xf32> to vector<16x16xf32>
      %cst_85 = arith.constant dense<0.000000e+00> : vector<16x16xf32>
      %74 = tpu.matmul %73, %71, %cst_85 {dimension_numbers = #tpu.dot_dimension_numbers<[1], [0], [0], [1], [0, 0, 1, 1], [], []>} : vector<16x16xf32>, vector<16x16xf32>, vector<16x16xf32> -> vector<16x16xf32>
      %75 = arith.addf %64, %74 : vector<16x16xf32>
      %c5 = arith.constant 5 : index
      %c0_86 = arith.constant 0 : index
      %c0_87 = arith.constant 0 : index
      %c0_88 = arith.constant 0 : index
      %76 = vector.load %arg3[%c5, %c0_86, %c0_87, %c0_88] : memref<7x2x16x16xf32, #tpu.memory_space<vmem>>, vector<1x1x16x16xf32>
      %77 = vector.shape_cast %76 : vector<1x1x16x16xf32> to vector<16x16xf32>
      %cst_89 = arith.constant dense<0.000000e+00> : vector<16x16xf32>
      %78 = tpu.matmul %18, %77, %cst_89 {dimension_numbers = #tpu.dot_dimension_numbers<[1], [0], [0], [1], [0, 0, 1, 1], [], []>} : vector<16x16xf32>, vector<16x16xf32>, vector<16x16xf32> -> vector<16x16xf32>
      %c5_90 = arith.constant 5 : index
      %c1_91 = arith.constant 1 : index
      %c0_92 = arith.constant 0 : index
      %c0_93 = arith.constant 0 : index
      %79 = vector.load %arg3[%c5_90, %c1_91, %c0_92, %c0_93] : memref<7x2x16x16xf32, #tpu.memory_space<vmem>>, vector<1x1x16x16xf32>
      %80 = vector.shape_cast %79 : vector<1x1x16x16xf32> to vector<16x16xf32>
      %cst_94 = arith.constant dense<0.000000e+00> : vector<16x16xf32>
      %81 = tpu.matmul %19, %80, %cst_94 {dimension_numbers = #tpu.dot_dimension_numbers<[1], [0], [0], [1], [0, 0, 1, 1], [], []>} : vector<16x16xf32>, vector<16x16xf32>, vector<16x16xf32> -> vector<16x16xf32>
      %82 = arith.addf %78, %81 : vector<16x16xf32>
      %c5_95 = arith.constant 5 : index
      %c0_96 = arith.constant 0 : index
      %c0_97 = arith.constant 0 : index
      %83 = vector.load %arg4[%c5_95, %c0_96, %c0_97] : memref<7x16x16xf32, #tpu.memory_space<vmem>>, vector<1x16x16xf32>
      %84 = vector.shape_cast %83 : vector<1x16x16xf32> to vector<16x16xf32>
      %cst_98 = arith.constant dense<0.000000e+00> : vector<16x16xf32>
      %85 = tpu.matmul %84, %82, %cst_98 {dimension_numbers = #tpu.dot_dimension_numbers<[1], [0], [0], [1], [0, 0, 1, 1], [], []>} : vector<16x16xf32>, vector<16x16xf32>, vector<16x16xf32> -> vector<16x16xf32>
      %86 = arith.addf %75, %85 : vector<16x16xf32>
      %c6 = arith.constant 6 : index
      %c0_99 = arith.constant 0 : index
      %c0_100 = arith.constant 0 : index
      %c0_101 = arith.constant 0 : index
      %87 = vector.load %arg3[%c6, %c0_99, %c0_100, %c0_101] : memref<7x2x16x16xf32, #tpu.memory_space<vmem>>, vector<1x1x16x16xf32>
      %88 = vector.shape_cast %87 : vector<1x1x16x16xf32> to vector<16x16xf32>
      %cst_102 = arith.constant dense<0.000000e+00> : vector<16x16xf32>
      %89 = tpu.matmul %18, %88, %cst_102 {dimension_numbers = #tpu.dot_dimension_numbers<[1], [0], [0], [1], [0, 0, 1, 1], [], []>} : vector<16x16xf32>, vector<16x16xf32>, vector<16x16xf32> -> vector<16x16xf32>
      %c6_103 = arith.constant 6 : index
      %c1_104 = arith.constant 1 : index
      %c0_105 = arith.constant 0 : index
      %c0_106 = arith.constant 0 : index
      %90 = vector.load %arg3[%c6_103, %c1_104, %c0_105, %c0_106] : memref<7x2x16x16xf32, #tpu.memory_space<vmem>>, vector<1x1x16x16xf32>
      %91 = vector.shape_cast %90 : vector<1x1x16x16xf32> to vector<16x16xf32>
      %cst_107 = arith.constant dense<0.000000e+00> : vector<16x16xf32>
      %92 = tpu.matmul %19, %91, %cst_107 {dimension_numbers = #tpu.dot_dimension_numbers<[1], [0], [0], [1], [0, 0, 1, 1], [], []>} : vector<16x16xf32>, vector<16x16xf32>, vector<16x16xf32> -> vector<16x16xf32>
      %93 = arith.addf %89, %92 : vector<16x16xf32>
      %c6_108 = arith.constant 6 : index
      %c0_109 = arith.constant 0 : index
      %c0_110 = arith.constant 0 : index
      %94 = vector.load %arg4[%c6_108, %c0_109, %c0_110] : memref<7x16x16xf32, #tpu.memory_space<vmem>>, vector<1x16x16xf32>
      %95 = vector.shape_cast %94 : vector<1x16x16xf32> to vector<16x16xf32>
      %cst_111 = arith.constant dense<0.000000e+00> : vector<16x16xf32>
      %96 = tpu.matmul %95, %93, %cst_111 {dimension_numbers = #tpu.dot_dimension_numbers<[1], [0], [0], [1], [0, 0, 1, 1], [], []>} : vector<16x16xf32>, vector<16x16xf32>, vector<16x16xf32> -> vector<16x16xf32>
      %97 = arith.addf %86, %96 : vector<16x16xf32>
      %cst_112 = arith.constant 0.000000e+00 : f32
      %98 = vector.broadcast %cst_112 : f32 to vector<16x16xf32>
      %99 = arith.subf %98, %97 : vector<16x16xf32>
      %100 = math.exp %99 : vector<16x16xf32>
      %cst_113 = arith.constant 1.000000e+00 : f32
      %101 = vector.broadcast %cst_113 : f32 to vector<16x16xf32>
      %102 = arith.addf %101, %100 : vector<16x16xf32>
      %103 = tpu.reciprocal %102 : vector<16x16xf32> -> vector<16x16xf32>
      %c0_114 = arith.constant 0 : index
      %c0_115 = arith.constant 0 : index
      %c0_116 = arith.constant 0 : index
      %104 = vector.load %arg5[%c0_114, %c0_115, %c0_116] : memref<1x16x16xf32, #tpu.memory_space<vmem>>, vector<1x16x16xf32>
      %105 = vector.shape_cast %104 : vector<1x16x16xf32> to vector<16x16xf32>
      %106 = vector.shape_cast %103 : vector<16x16xf32> to vector<1x16x16xf32>
      tpu.vector_store %arg5[%c0_114, %c0_115, %c0_116], %106 {strides = array<i32>} : memref<1x16x16xf32, #tpu.memory_space<vmem>>, vector<1x16x16xf32>,
    } else {
    }
    return
  }
  func.func @transform_0(%arg0: i32, %arg1: i32) -> (i32, i32, i32, i32) {
    %c0_i32 = arith.constant 0 : i32
    %c0_i32_0 = arith.constant 0 : i32
    %c0_i32_1 = arith.constant 0 : i32
    return %arg0, %arg1, %c0_i32, %c0_i32_0 : i32, i32, i32, i32
  }
  func.func @transform_1(%arg0: i32, %arg1: i32) -> (i32, i32, i32, i32) {
    %c0_i32 = arith.constant 0 : i32
    %c0_i32_0 = arith.constant 0 : i32
    %c0_i32_1 = arith.constant 0 : i32
    %c0_i32_2 = arith.constant 0 : i32
    %c0_i32_3 = arith.constant 0 : i32
    return %c0_i32, %c0_i32_0, %c0_i32_1, %c0_i32_2 : i32, i32, i32, i32
  }
  func.func @transform_2(%arg0: i32, %arg1: i32) -> (i32, i32, i32) {
    %c0_i32 = arith.constant 0 : i32
    %c0_i32_0 = arith.constant 0 : i32
    %c0_i32_1 = arith.constant 0 : i32
    %c0_i32_2 = arith.constant 0 : i32
    return %c0_i32, %c0_i32_0, %c0_i32_1 : i32, i32, i32
  }
  func.func @transform_3(%arg0: i32, %arg1: i32) -> (i32, i32, i32) {
    %c0_i32 = arith.constant 0 : i32
    %c0_i32_0 = arith.constant 0 : i32
    %c0_i32_1 = arith.constant 0 : i32
    return %arg0, %c0_i32, %c0_i32_0 : i32, i32, i32
  }
}

</mosaic_0001>

<llo_original>
// kernel: tpu_custom_call.1
$region0: #{tpu_custom_call.1}
  #allocation0 [shape = 'u32[]', space=smem, size = 0x4, offset = 0x4, fixed_abs, tag = 'smem constant byte address 0x4 - core index']
  #allocation1 [shape = 'u32[72,128]{1,0:T(1,128)}', space=vmem, size = 0x9000, scoped, tag = 'internal scratch']
  #allocation2 [shape = 'f32[16,16]{1,0:T(8,128)}', space=vmem, size = 0x2000, scoped, tag = 'scratch operand']
  #allocation3 [shape = 'f32[16,16]{1,0:T(8,128)}', space=vmem, size = 0x2000, scoped, tag = 'scratch operand']
  %s0 = inlined_call_operand.vmem [shape: f32[2,64,16,16], index: 0, kind: input, shape index: {}]
  %s1 = inlined_call_operand.vmem [shape: f32[7,2,16,16], index: 1, kind: input, shape index: {}]
  %s2 = inlined_call_operand.vmem [shape: f32[7,16,16], index: 2, kind: input, shape index: {}]
  %s3 = inlined_call_operand.hbm [shape: f32[2,16,16], index: 3, kind: output, shape index: {}]
  %s4 = sld [smem:[#allocation0]]
  $region53: #{tpu_custom_call.1} parent=0
    _
  %s6 = ssub.s32 1, %s4
  %s7 = scalar_select 0, %s6, %s4
  $region1: #{tpu_custom_call.1} parent=0
    #allocation4 [shape = 'u8[16384]{0}', space=vmem, size = 0x4000, scoped, tag = 'output window, operand 0']
    #allocation5 [shape = 's32[2]{0}', space=sflag, size = 0x8, scoped, tag = 'scoped memory for tpu_custom_call.1']
    %8 = vsyncpa [#allocation5], 0
    %s9 = scalar_lea.sflag [#allocation5], 1
    %10 = vsyncpa %s9, 0
    loop: start=0, step=1, limit=10
    $region2: #{tpu_custom_call.1} parent=1 // loop_pre_header
      _
    $region3: #{tpu_custom_call.1} parent=1 // loop_header
      %s12 = sphi 0, %s16
      %p13 = scmp.ge.s32.totalorder %s12, 10
      %s19 = sphi 0, %s31
      %s20 = sphi 0, %s27
      %s21 = sphi 0, %s19
      %s22 = sphi 0, %s20
      %s23 = sphi 0, %s21
      %s24 = sphi 0, %s22
      %s36 = sphi 0, %s38
      %s39 = sphi 0, %s36
      %s40 = sphi 0, %s39
      %s56 = sphi 0, %s40
      %s60 = sphi 0, %s60
      %s62 = sphi 0, %s60
      %s63 = sphi 0, %s62
      %s77 = sphi 0, %s63
      %s81 = sphi 0, %s81
      %s83 = sphi 0, %s81
      %s84 = sphi 0, %s83
      %s98 = sphi 0, %s84
      %s104 = sphi 0, %s106
      %s107 = sphi 0, %s104
      %s108 = sphi 0, %s107
      %s124 = sphi 0, %s108
    $region4: #{tpu_custom_call.1} parent=1 // loop_header_branch
      %15 = sbr.rel (%p13) target = $region8
    $region5: #{tpu_custom_call.1} parent=1 // loop_body
      %s17 = ssub.s32 %s12, 1
      %s18 = ssub.s32 %s12, 2
      %s25 = sadd.s32 1, %s20
      %p26 = scmp.ge.s32.totalorder %s25, 4
      %s27 = scalar_select %p26, 0, %s25
      %s28 = sadd.s32 1, %s19
      %s29 = scalar_select %p26, %s28, %s19
      %p30 = scmp.ge.s32.totalorder %s29, 2
      %s31 = scalar_select %p30, 0, %s29
      %s32 = ssub.s32 %s19, %s31
      %s33 = ssub.s32 %s20, %s27
      %s34 = sor.u32 %s32, %s33
      %p35 = scmp.eq.s32.totalorder %s34, 0
      %s37 = sadd.s32 %s36, 1
      %s38 = scalar_select %p35, %s36, %s37
      %p41 = pneg %p35
      %p42 = scmp.eq.s32.totalorder %s12, 7
      %p43 = por %p41, %p42
      %p44 = scmp.ne.s32.totalorder %s36, %s39
      %p45 = scmp.eq.s32.totalorder %s12, 0
      %p46 = por %p44, %p45
      %p47 = scmp.ne.s32.totalorder %s36, %s39
      %p48 = scmp.eq.s32.totalorder %s17, 7
      %p49 = por %p47, %p48
      %p50 = scmp.ne.s32.totalorder %s39, %s40
      %p51 = scmp.eq.s32.totalorder %s17, 0
      %p52 = por %p50, %p51
      %p53 = scmp.ne.s32.totalorder %s39, %s40
      %p54 = scmp.eq.s32.totalorder %s18, 7
      %p55 = por %p53, %p54
      %p57 = scmp.ne.s32.totalorder %s40, %s56
      %p58 = scmp.eq.s32.totalorder %s18, 0
      %p59 = por %p57, %p58
      %s61 = sadd.s32 %s60, 1
      %p64 = scmp.eq.s32.totalorder %s12, 7
      %p65 = scmp.ne.s32.totalorder %s60, %s62
      %p66 = scmp.eq.s32.totalorder %s12, 0
      %p67 = por %p65, %p66
      %p68 = scmp.ne.s32.totalorder %s60, %s62
      %p69 = scmp.eq.s32.totalorder %s17, 7
      %p70 = por %p68, %p69
      %p71 = scmp.ne.s32.totalorder %s62, %s63
      %p72 = scmp.eq.s32.totalorder %s17, 0
      %p73 = por %p71, %p72
      %p74 = scmp.ne.s32.totalorder %s62, %s63
      %p75 = scmp.eq.s32.totalorder %s18, 7
      %p76 = por %p74, %p75
      %p78 = scmp.ne.s32.totalorder %s63, %s77
      %p79 = scmp.eq.s32.totalorder %s18, 0
      %p80 = por %p78, %p79
      %s82 = sadd.s32 %s81, 1
      %p85 = scmp.eq.s32.totalorder %s12, 7
      %p86 = scmp.ne.s32.totalorder %s81, %s83
      %p87 = scmp.eq.s32.totalorder %s12, 0
      %p88 = por %p86, %p87
      %p89 = scmp.ne.s32.totalorder %s81, %s83
      %p90 = scmp.eq.s32.totalorder %s17, 7
      %p91 = por %p89, %p90
      %p92 = scmp.ne.s32.totalorder %s83, %s84
      %p93 = scmp.eq.s32.totalorder %s17, 0
      %p94 = por %p92, %p93
      %p95 = scmp.ne.s32.totalorder %s83, %s84
      %p96 = scmp.eq.s32.totalorder %s18, 7
      %p97 = por %p95, %p96
      %p99 = scmp.ne.s32.totalorder %s84, %s98
      %p100 = scmp.eq.s32.totalorder %s18, 0
      %p101 = por %p99, %p100
      %s102 = ssub.s32 %s19, %s31
      %p103 = scmp.eq.s32.totalorder %s102, 0
      %s105 = sadd.s32 %s104, 1
      %s106 = scalar_select %p103, %s104, %s105
      %p109 = pneg %p103
      %p110 = scmp.eq.s32.totalorder %s12, 7
      %p111 = por %p109, %p110
      %p112 = scmp.ne.s32.totalorder %s104, %s107
      %p113 = scmp.eq.s32.totalorder %s12, 0
      %p114 = por %p112, %p113
      %p115 = scmp.ne.s32.totalorder %s104, %s107
      %p116 = scmp.eq.s32.totalorder %s17, 7
      %p117 = por %p115, %p116
      %p118 = scmp.ne.s32.totalorder %s107, %s108
      %p119 = scmp.eq.s32.totalorder %s17, 0
      %p120 = por %p118, %p119
      %p121 = scmp.ne.s32.totalorder %s107, %s108
      %p122 = scmp.eq.s32.totalorder %s18, 7
      %p123 = por %p121, %p122
      %p125 = scmp.ne.s32.totalorder %s108, %s124
      %p126 = scmp.eq.s32.totalorder %s18, 0
      %p127 = por %p125, %p126
      %p128 = scmp.le.s32.totalorder 1, %s12
      %p129 = scmp.lt.s32.totalorder %s12, 9
      %p130 = pnand %p128, %p129
      %p131 = pneg %p130
      // Predicated region
      $region9: #{tpu_custom_call.1} parent=5 // pred_check
        _
      $region10: #{tpu_custom_call.1} parent=5 // pred_check_branch
        %133 = sbr.rel (%p130) target = $region12
      $region11: #{tpu_custom_call.1} parent=5 // pred_region
        %s134 = ssub.s32 %s12, 1
        // Predicated region
        $region13: #{tpu_custom_call.1} parent=11 // pred_check
          %p135 = pneg %p73
        $region14: #{tpu_custom_call.1} parent=11 // pred_check_branch
          %137 = sbr.rel (%p135) target = $region16
        $region15: #{tpu_custom_call.1} parent=11 // pred_region
          _
        $region16: #{tpu_custom_call.1} parent=11 // pred_fallthru
          _
        // Predicated region
        $region17: #{tpu_custom_call.1} parent=11 // pred_check
          %p138 = pneg %p94
        $region18: #{tpu_custom_call.1} parent=11 // pred_check_branch
          %140 = sbr.rel (%p138) target = $region20
        $region19: #{tpu_custom_call.1} parent=11 // pred_region
          _
        $region20: #{tpu_custom_call.1} parent=11 // pred_fallthru
          _
      $region12: #{tpu_custom_call.1} parent=5 // pred_fallthru
        _
      %p141 = scmp.lt.s32.totalorder %s12, 8
      // Predicated region
      $region21: #{tpu_custom_call.1} parent=5 // pred_check
        %p142 = pneg %p141
      $region22: #{tpu_custom_call.1} parent=5 // pred_check_branch
        %144 = sbr.rel (%p142) target = $region24
      $region23: #{tpu_custom_call.1} parent=5 // pred_region
        // Predicated region
        $region25: #{tpu_custom_call.1} parent=23 // pred_check
          %p145 = pneg %p46
        $region26: #{tpu_custom_call.1} parent=23 // pred_check_branch
          %147 = sbr.rel (%p145) target = $region28
        $region27: #{tpu_custom_call.1} parent=23 // pred_region
          %s148 = smul.u32 16, %s20
          %p149 = scmp.lt.s32.totalorder %s19, 1
          %s150 = scalar_select %p149, %s19, 1
          %p151 = scmp.lt.s32.totalorder %s148, 63
          %s152 = scalar_select %p151, %s148, 63
          %s153 = smul.addr %s152, 2
          %s154 = smul.addr %s150, 128
          %s155 = sadd.s32 %s153, %s154
          %s156 = smul.addr %s155, 8
          %s157 = scalar_lea.vmem %s0, %s156
          %s158 = smul.u32 16, %s20
        $region28: #{tpu_custom_call.1} parent=23 // pred_fallthru
          _
      $region24: #{tpu_custom_call.1} parent=5 // pred_fallthru
        _
      %p159 = scmp.le.s32.totalorder 1, %s12
      %p160 = scmp.lt.s32.totalorder %s12, 9
      %p161 = pnand %p159, %p160
      %p162 = pneg %p161
      // Predicated region
      $region29: #{tpu_custom_call.1} parent=5 // pred_check
        _
      $region30: #{tpu_custom_call.1} parent=5 // pred_check_branch
        %164 = sbr.rel (%p161) target = $region32
      $region31: #{tpu_custom_call.1} parent=5 // pred_region
        %s165 = ssub.s32 %s12, 1
        %s166 = smul.u32 16, %s22
        %p167 = scmp.lt.s32.totalorder %s21, 1
        %s168 = scalar_select %p167, %s21, 1
        %p169 = scmp.lt.s32.totalorder %s166, 63
        %s170 = scalar_select %p169, %s166, 63
        %s171 = smul.addr %s170, 2
        %s172 = smul.addr %s168, 128
        %s173 = sadd.s32 %s171, %s172
        %s174 = smul.addr %s173, 8
        %s175 = scalar_lea.vmem %s0, %s174
        %p176 = pneg %p52
        %p177 = pneg %p49
        %p178 = pneg %p73
        %p179 = pneg %p70
        %p180 = pneg %p94
        %p181 = pneg %p91
        %p182 = pneg %p120
        %p183 = pneg %p117
        %s184 = sand.u32 %s107, 1
        %s185 = scalar_lea.sflag [#allocation5], %s184
        %s186 = sand.u32 %s107, 1
        %s187 = smul.addr %s186, 16
        %s188 = scalar_lea.vmem [#allocation4], %s187
        %s189 = smul.u32 16, %s22
        %p190 = scmp.lt.s32.totalorder %s21, 1
        %s191 = scalar_select %p190, %s21, 1
        %p192 = scmp.lt.s32.totalorder %s189, 63
        %s193 = scalar_select %p192, %s189, 63
        %s194 = smul.addr %s193, 2
        %s195 = smul.addr %s191, 128
        %s196 = sadd.s32 %s194, %s195
        %s197 = smul.addr %s196, 8
        %s198 = scalar_lea.vmem %s0, %s197
        %s199 = smul.u32 16, %s22
        %p200 = scmp.eq.s32.totalorder %s22, 0
        // Predicated region
        $region33: #{tpu_custom_call.1} parent=31 // pred_check
          %p201 = pneg %p200
        $region34: #{tpu_custom_call.1} parent=31 // pred_check_branch
          %203 = sbr.rel (%p201) target = $region36
        $region35: #{tpu_custom_call.1} parent=31 // pred_region
          %vm204 = vcmask 130048
          %205 = vst.msk [vmem:[#allocation2] sm:$0xff] %vm204, 0.0
          %206 = vst.msk [vmem:[#allocation2 + $0x8] sm:$0xff] %vm204, 0.0
          %207 = vst.msk [vmem:[#allocation3] sm:$0xff] %vm204, -inf
          %208 = vst.msk [vmem:[#allocation3 + $0x8] sm:$0xff] %vm204, -inf
        $region36: #{tpu_custom_call.1} parent=31 // pred_fallthru
          _
        %v209 = vld [vmem:[%s198] sm:$0xff]
        %v210 = vld [vmem:[%s198 + $0x8] sm:$0xff]
        %v211 = vld [vmem:[%s198 + $0x10] sm:$0xff]
        %v212 = vld [vmem:[%s198 + $0x18] sm:$0xff]
        %v213 = vld [vmem:[%s198 + $0x20] sm:$0xff]
        %v214 = vld [vmem:[%s198 + $0x28] sm:$0xff]
        %v215 = vld [vmem:[%s198 + $0x30] sm:$0xff]
        %v216 = vld [vmem:[%s198 + $0x38] sm:$0xff]
        %v217 = vld [vmem:[%s198 + $0x40] sm:$0xff]
        %v218 = vld [vmem:[%s198 + $0x48] sm:$0xff]
        %v219 = vld [vmem:[%s198 + $0x50] sm:$0xff]
        %v220 = vld [vmem:[%s198 + $0x58] sm:$0xff]
        %v221 = vld [vmem:[%s198 + $0x60] sm:$0xff]
        %v222 = vld [vmem:[%s198 + $0x68] sm:$0xff]
        %v223 = vld [vmem:[%s198 + $0x70] sm:$0xff]
        %v224 = vld [vmem:[%s198 + $0x78] sm:$0xff]
        %v225 = vld [vmem:[%s198 + $0x80] sm:$0xff]
        %v226 = vld [vmem:[%s198 + $0x88] sm:$0xff]
        %v227 = vld [vmem:[%s198 + $0x90] sm:$0xff]
        %v228 = vld [vmem:[%s198 + $0x98] sm:$0xff]
        %v229 = vld [vmem:[%s198 + $0xa0] sm:$0xff]
        %v230 = vld [vmem:[%s198 + $0xa8] sm:$0xff]
        %v231 = vld [vmem:[%s198 + $0xb0] sm:$0xff]
        %v232 = vld [vmem:[%s198 + $0xb8] sm:$0xff]
        %v233 = vld [vmem:[%s198 + $0xc0] sm:$0xff]
        %v234 = vld [vmem:[%s198 + $0xc8] sm:$0xff]
        %v235 = vld [vmem:[%s198 + $0xd0] sm:$0xff]
        %v236 = vld [vmem:[%s198 + $0xd8] sm:$0xff]
        %v237 = vld [vmem:[%s198 + $0xe0] sm:$0xff]
        %v238 = vld [vmem:[%s198 + $0xe8] sm:$0xff]
        %v239 = vld [vmem:[%s198 + $0xf0] sm:$0xff]
        %v240 = vld [vmem:[%s198 + $0xf8] sm:$0xff]
        %v241 = vld [vmem:[#allocation2] sm:$0xff]
        %v242 = vld [vmem:[#allocation2 + $0x8] sm:$0xff]
        %vm243 = vcmask 130048
        %v244 = vsel %vm243, %v209, 0.0
        %v245 = vsel %vm243, %v211, 0.0
        %v246 = vadd.f32 %v244, %v245
        %v247 = vsel %vm243, %v213, 0.0
        %v248 = vadd.f32 %v246, %v247
        %v249 = vsel %vm243, %v215, 0.0
        %v250 = vadd.f32 %v248, %v249
        %v251 = vsel %vm243, %v217, 0.0
        %v252 = vadd.f32 %v250, %v251
        %v253 = vsel %vm243, %v219, 0.0
        %v254 = vadd.f32 %v252, %v253
        %v255 = vsel %vm243, %v221, 0.0
        %v256 = vadd.f32 %v254, %v255
        %v257 = vsel %vm243, %v223, 0.0
        %v258 = vadd.f32 %v256, %v257
        %v259 = vsel %vm243, %v225, 0.0
        %v260 = vadd.f32 %v258, %v259
        %v261 = vsel %vm243, %v227, 0.0
        %v262 = vadd.f32 %v260, %v261
        %v263 = vsel %vm243, %v229, 0.0
        %v264 = vadd.f32 %v262, %v263
        %v265 = vsel %vm243, %v231, 0.0
        %v266 = vadd.f32 %v264, %v265
        %v267 = vsel %vm243, %v233, 0.0
        %v268 = vadd.f32 %v266, %v267
        %v269 = vsel %vm243, %v235, 0.0
        %v270 = vadd.f32 %v268, %v269
        %v271 = vsel %vm243, %v237, 0.0
        %v272 = vadd.f32 %v270, %v271
        %v273 = vsel %vm243, %v239, 0.0
        %v274 = vadd.f32 %v272, %v273
        %v275 = vsel %vm243, %v210, 0.0
        %v276 = vsel %vm243, %v212, 0.0
        %v277 = vadd.f32 %v275, %v276
        %v278 = vsel %vm243, %v214, 0.0
        %v279 = vadd.f32 %v277, %v278
        %v280 = vsel %vm243, %v216, 0.0
        %v281 = vadd.f32 %v279, %v280
        %v282 = vsel %vm243, %v218, 0.0
        %v283 = vadd.f32 %v281, %v282
        %v284 = vsel %vm243, %v220, 0.0
        %v285 = vadd.f32 %v283, %v284
        %v286 = vsel %vm243, %v222, 0.0
        %v287 = vadd.f32 %v285, %v286
        %v288 = vsel %vm243, %v224, 0.0
        %v289 = vadd.f32 %v287, %v288
        %v290 = vsel %vm243, %v226, 0.0
        %v291 = vadd.f32 %v289, %v290
        %v292 = vsel %vm243, %v228, 0.0
        %v293 = vadd.f32 %v291, %v292
        %v294 = vsel %vm243, %v230, 0.0
        %v295 = vadd.f32 %v293, %v294
        %v296 = vsel %vm243, %v232, 0.0
        %v297 = vadd.f32 %v295, %v296
        %v298 = vsel %vm243, %v234, 0.0
        %v299 = vadd.f32 %v297, %v298
        %v300 = vsel %vm243, %v236, 0.0
        %v301 = vadd.f32 %v299, %v300
        %v302 = vsel %vm243, %v238, 0.0
        %v303 = vadd.f32 %v301, %v302
        %v304 = vsel %vm243, %v240, 0.0
        %v305 = vadd.f32 %v303, %v304
        %v306 = vadd.f32 %v241, %v274
        %v307 = vadd.f32 %v242, %v305
        %308 = vst.msk [vmem:[#allocation2] sm:$0xff] %vm243, %v306
        %309 = vst.msk [vmem:[#allocation2 + $0x8] sm:$0xff] %vm243, %v307
        %v310 = vld [vmem:[#allocation3] sm:$0xff]
        %v311 = vld [vmem:[#allocation3 + $0x8] sm:$0xff]
        %v312 = vsel %vm243, %v209, -inf
        %v313 = vsel %vm243, %v211, -inf
        %v314 = vsel %vm243, %v213, -inf
        %v315 = vmax.f32 %v312, %v314
        %v316 = vsel %vm243, %v215, -inf
        %v317 = vmax.f32 %v313, %v316
        %v318 = vsel %vm243, %v217, -inf
        %v319 = vmax.f32 %v315, %v318
        %v320 = vsel %vm243, %v219, -inf
        %v321 = vmax.f32 %v317, %v320
        %v322 = vsel %vm243, %v221, -inf
        %v323 = vmax.f32 %v319, %v322
        %v324 = vsel %vm243, %v223, -inf
        %v325 = vmax.f32 %v321, %v324
        %v326 = vsel %vm243, %v225, -inf
        %v327 = vmax.f32 %v323, %v326
        %v328 = vsel %vm243, %v227, -inf
        %v329 = vmax.f32 %v325, %v328
        %v330 = vsel %vm243, %v229, -inf
        %v331 = vmax.f32 %v327, %v330
        %v332 = vsel %vm243, %v231, -inf
        %v333 = vmax.f32 %v329, %v332
        %v334 = vsel %vm243, %v233, -inf
        %v335 = vmax.f32 %v331, %v334
        %v336 = vsel %vm243, %v235, -inf
        %v337 = vmax.f32 %v333, %v336
        %v338 = vsel %vm243, %v237, -inf
        %v339 = vmax.f32 %v335, %v338
        %v340 = vsel %vm243, %v239, -inf
        %v341 = vmax.f32 %v337, %v340
        %v342 = vmax.f32 %v339, %v341
        %v343 = vsel %vm243, %v210, -inf
        %v344 = vsel %vm243, %v212, -inf
        %v345 = vsel %vm243, %v214, -inf
        %v346 = vmax.f32 %v343, %v345
        %v347 = vsel %vm243, %v216, -inf
        %v348 = vmax.f32 %v344, %v347
        %v349 = vsel %vm243, %v218, -inf
        %v350 = vmax.f32 %v346, %v349
        %v351 = vsel %vm243, %v220, -inf
        %v352 = vmax.f32 %v348, %v351
        %v353 = vsel %vm243, %v222, -inf
        %v354 = vmax.f32 %v350, %v353
        %v355 = vsel %vm243, %v224, -inf
        %v356 = vmax.f32 %v352, %v355
        %v357 = vsel %vm243, %v226, -inf
        %v358 = vmax.f32 %v354, %v357
        %v359 = vsel %vm243, %v228, -inf
        %v360 = vmax.f32 %v356, %v359
        %v361 = vsel %vm243, %v230, -inf
        %v362 = vmax.f32 %v358, %v361
        %v363 = vsel %vm243, %v232, -inf
        %v364 = vmax.f32 %v360, %v363
        %v365 = vsel %vm243, %v234, -inf
        %v366 = vmax.f32 %v362, %v365
        %v367 = vsel %vm243, %v236, -inf
        %v368 = vmax.f32 %v364, %v367
        %v369 = vsel %vm243, %v238, -inf
        %v370 = vmax.f32 %v366, %v369
        %v371 = vsel %vm243, %v240, -inf
        %v372 = vmax.f32 %v368, %v371
        %v373 = vmax.f32 %v370, %v372
        %v374 = vmax.f32 %v310, %v342
        %v375 = vmax.f32 %v311, %v373
        %376 = vst.msk [vmem:[#allocation3] sm:$0xff] %vm243, %v374
        %377 = vst.msk [vmem:[#allocation3 + $0x8] sm:$0xff] %vm243, %v375
        %p378 = scmp.eq.s32.totalorder %s22, 3
        // Predicated region
        $region37: #{tpu_custom_call.1} parent=31 // pred_check
          %p379 = pneg %p378
        $region38: #{tpu_custom_call.1} parent=31 // pred_check_branch
          %381 = sbr.rel (%p379) target = $region40
        $region39: #{tpu_custom_call.1} parent=31 // pred_region
          %v382 = vld [vmem:[#allocation2] sm:$0xff]
          %v383 = vld [vmem:[#allocation2 + $0x8] sm:$0xff]
          %v384 = vmul.f32 %v382, 0.015625
          %v385 = vmul.f32 %v383, 0.015625
          %v386 = vld [vmem:[#allocation3] sm:$0xff]
          %v387 = vld [vmem:[#allocation3 + $0x8] sm:$0xff]
          %v388 = vld [vmem:[%s1] sm:$0xff]
          %v389 = vld [vmem:[%s1 + $0x8] sm:$0xff]
          %s390 = scalar_lea.vmem %s1, 16
          %v391 = vld [vmem:[%s390] sm:$0xff]
          %v392 = vld [vmem:[%s390 + $0x8] sm:$0xff]
          %v394 = vsel %vm243, %v386, 0
          %v397 = vsel %vm243, %v387, 0
          %399 = vmatpush.msra.mxu0 0.0
          %400 = vmatpush.msra.mxu0 0.0
          %401 = vmatpush.msra.mxu0 0.0
          %402 = vmatpush.msra.mxu0 0.0
          %403 = vmatpush.msra.mxu0 0.0
          %404 = vmatpush.msra.mxu0 0.0
          %405 = vmatpush.msra.mxu0 0.0
          %406 = vmatpush.msra.mxu0 0.0
          %407 = vmatpush.msra.mxu0 0.0
          %408 = vmatpush.msra.mxu0 0.0
          %409 = vmatpush.msra.mxu0 0.0
          %410 = vmatpush.msra.mxu0 0.0
          %411 = vmatpush.msra.mxu0 0.0
          %412 = vmatpush.msra.mxu0 0.0
          %413 = vmatpush.msra.mxu0 %v392
          %414 = vmatpush.msra.mxu0 %v391
          %415 = vmatmul.f32.gmra.mxu0 %v394
          %v416 = vpop.f32.mrf.mxu0
          %v417 = vadd.f32 0.0, %v416
          %418 = vmatmul.f32.gmra.mxu0 %v397
          %v419 = vpop.f32.mrf.mxu0
          %v420 = vadd.f32 0.0, %v419
          %421 = vdwg.mxu0
          %v423 = vsel %vm243, %v384, 0
          %v426 = vsel %vm243, %v385, 0
          %428 = vmatpush.msra.mxu0 0.0
          %429 = vmatpush.msra.mxu0 0.0
          %430 = vmatpush.msra.mxu0 0.0
          %431 = vmatpush.msra.mxu0 0.0
          %432 = vmatpush.msra.mxu0 0.0
          %433 = vmatpush.msra.mxu0 0.0
          %434 = vmatpush.msra.mxu0 0.0
          %435 = vmatpush.msra.mxu0 0.0
          %436 = vmatpush.msra.mxu0 0.0
          %437 = vmatpush.msra.mxu0 0.0
          %438 = vmatpush.msra.mxu0 0.0
          %439 = vmatpush.msra.mxu0 0.0
          %440 = vmatpush.msra.mxu0 0.0
          %441 = vmatpush.msra.mxu0 0.0
          %442 = vmatpush.msra.mxu0 %v389
          %443 = vmatpush.msra.mxu0 %v388
          %444 = vmatmul.f32.gmra.mxu0 %v423
          %v445 = vpop.f32.mrf.mxu0
          %v446 = vadd.f32 %v417, %v445
          %447 = vmatmul.f32.gmra.mxu0 %v426
          %v448 = vpop.f32.mrf.mxu0
          %v449 = vadd.f32 %v420, %v448
          %450 = vdwg.mxu0
          %v451 = vld [vmem:[%s2] sm:$0xff]
          %v452 = vld [vmem:[%s2 + $0x8] sm:$0xff]
          %s453 = scalar_lea.vmem %s1, 32
          %v454 = vld [vmem:[%s453] sm:$0xff]
          %v455 = vld [vmem:[%s453 + $0x8] sm:$0xff]
          %s456 = scalar_lea.vmem %s1, 48
          %v457 = vld [vmem:[%s456] sm:$0xff]
          %v458 = vld [vmem:[%s456 + $0x8] sm:$0xff]
          %459 = vmatpush.msra.mxu0 0.0
          %460 = vmatpush.msra.mxu0 0.0
          %461 = vmatpush.msra.mxu0 0.0
          %462 = vmatpush.msra.mxu0 0.0
          %463 = vmatpush.msra.mxu0 0.0
          %464 = vmatpush.msra.mxu0 0.0
          %465 = vmatpush.msra.mxu0 0.0
          %466 = vmatpush.msra.mxu0 0.0
          %467 = vmatpush.msra.mxu0 0.0
          %468 = vmatpush.msra.mxu0 0.0
          %469 = vmatpush.msra.mxu0 0.0
          %470 = vmatpush.msra.mxu0 0.0
          %471 = vmatpush.msra.mxu0 0.0
          %472 = vmatpush.msra.mxu0 0.0
          %473 = vmatpush.msra.mxu0 %v458
          %474 = vmatpush.msra.mxu0 %v457
          %475 = vmatmul.f32.gmra.mxu0 %v394
          %v476 = vpop.f32.mrf.mxu0
          %v477 = vadd.f32 0.0, %v476
          %478 = vmatmul.f32.gmra.mxu0 %v397
          %v479 = vpop.f32.mrf.mxu0
          %v480 = vadd.f32 0.0, %v479
          %481 = vdwg.mxu0
          %482 = vmatpush.msra.mxu0 0.0
          %483 = vmatpush.msra.mxu0 0.0
          %484 = vmatpush.msra.mxu0 0.0
          %485 = vmatpush.msra.mxu0 0.0
          %486 = vmatpush.msra.mxu0 0.0
          %487 = vmatpush.msra.mxu0 0.0
          %488 = vmatpush.msra.mxu0 0.0
          %489 = vmatpush.msra.mxu0 0.0
          %490 = vmatpush.msra.mxu0 0.0
          %491 = vmatpush.msra.mxu0 0.0
          %492 = vmatpush.msra.mxu0 0.0
          %493 = vmatpush.msra.mxu0 0.0
          %494 = vmatpush.msra.mxu0 0.0
          %495 = vmatpush.msra.mxu0 0.0
          %496 = vmatpush.msra.mxu0 %v455
          %497 = vmatpush.msra.mxu0 %v454
          %498 = vmatmul.f32.gmra.mxu0 %v423
          %v499 = vpop.f32.mrf.mxu0
          %v500 = vadd.f32 %v477, %v499
          %501 = vmatmul.f32.gmra.mxu0 %v426
          %v502 = vpop.f32.mrf.mxu0
          %v503 = vadd.f32 %v480, %v502
          %504 = vdwg.mxu0
          %s505 = scalar_lea.vmem %s2, 16
          %v506 = vld [vmem:[%s505] sm:$0xff]
          %v507 = vld [vmem:[%s505 + $0x8] sm:$0xff]
          %v509 = vsel %vm243, %v506, 0
          %v512 = vsel %vm243, %v507, 0
          %514 = vmatpush.msra.mxu0 0.0
          %515 = vmatpush.msra.mxu0 0.0
          %516 = vmatpush.msra.mxu0 0.0
          %517 = vmatpush.msra.mxu0 0.0
          %518 = vmatpush.msra.mxu0 0.0
          %519 = vmatpush.msra.mxu0 0.0
          %520 = vmatpush.msra.mxu0 0.0
          %521 = vmatpush.msra.mxu0 0.0
          %522 = vmatpush.msra.mxu0 0.0
          %523 = vmatpush.msra.mxu0 0.0
          %524 = vmatpush.msra.mxu0 0.0
          %525 = vmatpush.msra.mxu0 0.0
          %526 = vmatpush.msra.mxu0 0.0
          %527 = vmatpush.msra.mxu0 0.0
          %528 = vmatpush.msra.mxu0 %v503
          %529 = vmatpush.msra.mxu0 %v500
          %530 = vmatmul.f32.gmra.mxu0 %v509
          %v531 = vpop.f32.mrf.mxu0
          %v532 = vadd.f32 0.0, %v531
          %533 = vmatmul.f32.gmra.mxu0 %v512
          %v534 = vpop.f32.mrf.mxu0
          %v535 = vadd.f32 0.0, %v534
          %536 = vdwg.mxu0
          %v538 = vsel %vm243, %v451, 0
          %v541 = vsel %vm243, %v452, 0
          %543 = vmatpush.msra.mxu0 0.0
          %544 = vmatpush.msra.mxu0 0.0
          %545 = vmatpush.msra.mxu0 0.0
          %546 = vmatpush.msra.mxu0 0.0
          %547 = vmatpush.msra.mxu0 0.0
          %548 = vmatpush.msra.mxu0 0.0
          %549 = vmatpush.msra.mxu0 0.0
          %550 = vmatpush.msra.mxu0 0.0
          %551 = vmatpush.msra.mxu0 0.0
          %552 = vmatpush.msra.mxu0 0.0
          %553 = vmatpush.msra.mxu0 0.0
          %554 = vmatpush.msra.mxu0 0.0
          %555 = vmatpush.msra.mxu0 0.0
          %556 = vmatpush.msra.mxu0 0.0
          %557 = vmatpush.msra.mxu0 %v449
          %558 = vmatpush.msra.mxu0 %v446
          %559 = vmatmul.f32.gmra.mxu0 %v538
          %v560 = vpop.f32.mrf.mxu0
          %v561 = vadd.f32 %v532, %v560
          %562 = vmatmul.f32.gmra.mxu0 %v541
          %v563 = vpop.f32.mrf.mxu0
          %v564 = vadd.f32 %v535, %v563
          %565 = vdwg.mxu0
          %s566 = scalar_lea.vmem %s1, 64
          %v567 = vld [vmem:[%s566] sm:$0xff]
          %v568 = vld [vmem:[%s566 + $0x8] sm:$0xff]
          %s569 = scalar_lea.vmem %s1, 80
          %v570 = vld [vmem:[%s569] sm:$0xff]
          %v571 = vld [vmem:[%s569 + $0x8] sm:$0xff]
          %572 = vmatpush.msra.mxu0 0.0
          %573 = vmatpush.msra.mxu0 0.0
          %574 = vmatpush.msra.mxu0 0.0
          %575 = vmatpush.msra.mxu0 0.0
          %576 = vmatpush.msra.mxu0 0.0
          %577 = vmatpush.msra.mxu0 0.0
          %578 = vmatpush.msra.mxu0 0.0
          %579 = vmatpush.msra.mxu0 0.0
          %580 = vmatpush.msra.mxu0 0.0
          %581 = vmatpush.msra.mxu0 0.0
          %582 = vmatpush.msra.mxu0 0.0
          %583 = vmatpush.msra.mxu0 0.0
          %584 = vmatpush.msra.mxu0 0.0
          %585 = vmatpush.msra.mxu0 0.0
          %586 = vmatpush.msra.mxu0 %v571
          %587 = vmatpush.msra.mxu0 %v570
          %588 = vmatmul.f32.gmra.mxu0 %v394
          %v589 = vpop.f32.mrf.mxu0
          %v590 = vadd.f32 0.0, %v589
          %591 = vmatmul.f32.gmra.mxu0 %v397
          %v592 = vpop.f32.mrf.mxu0
          %v593 = vadd.f32 0.0, %v592
          %594 = vdwg.mxu0
          %595 = vmatpush.msra.mxu0 0.0
          %596 = vmatpush.msra.mxu0 0.0
          %597 = vmatpush.msra.mxu0 0.0
          %598 = vmatpush.msra.mxu0 0.0
          %599 = vmatpush.msra.mxu0 0.0
          %600 = vmatpush.msra.mxu0 0.0
          %601 = vmatpush.msra.mxu0 0.0
          %602 = vmatpush.msra.mxu0 0.0
          %603 = vmatpush.msra.mxu0 0.0
          %604 = vmatpush.msra.mxu0 0.0
          %605 = vmatpush.msra.mxu0 0.0
          %606 = vmatpush.msra.mxu0 0.0
          %607 = vmatpush.msra.mxu0 0.0
          %608 = vmatpush.msra.mxu0 0.0
          %609 = vmatpush.msra.mxu0 %v568
          %610 = vmatpush.msra.mxu0 %v567
          %611 = vmatmul.f32.gmra.mxu0 %v423
          %v612 = vpop.f32.mrf.mxu0
          %v613 = vadd.f32 %v590, %v612
          %614 = vmatmul.f32.gmra.mxu0 %v426
          %v615 = vpop.f32.mrf.mxu0
          %v616 = vadd.f32 %v593, %v615
          %617 = vdwg.mxu0
          %s618 = scalar_lea.vmem %s2, 32
          %v619 = vld [vmem:[%s618] sm:$0xff]
          %v620 = vld [vmem:[%s618 + $0x8] sm:$0xff]
          %v622 = vsel %vm243, %v619, 0
          %v625 = vsel %vm243, %v620, 0
          %627 = vmatpush.msra.mxu0 0.0
          %628 = vmatpush.msra.mxu0 0.0
          %629 = vmatpush.msra.mxu0 0.0
          %630 = vmatpush.msra.mxu0 0.0
          %631 = vmatpush.msra.mxu0 0.0
          %632 = vmatpush.msra.mxu0 0.0
          %633 = vmatpush.msra.mxu0 0.0
          %634 = vmatpush.msra.mxu0 0.0
          %635 = vmatpush.msra.mxu0 0.0
          %636 = vmatpush.msra.mxu0 0.0
          %637 = vmatpush.msra.mxu0 0.0
          %638 = vmatpush.msra.mxu0 0.0
          %639 = vmatpush.msra.mxu0 0.0
          %640 = vmatpush.msra.mxu0 0.0
          %641 = vmatpush.msra.mxu0 %v616
          %642 = vmatpush.msra.mxu0 %v613
          %643 = vmatmul.f32.gmra.mxu0 %v622
          %v644 = vpop.f32.mrf.mxu0
          %v645 = vadd.f32 0.0, %v644
          %646 = vmatmul.f32.gmra.mxu0 %v625
          %v647 = vpop.f32.mrf.mxu0
          %v648 = vadd.f32 0.0, %v647
          %649 = vdwg.mxu0
          %v650 = vadd.f32 %v561, %v645
          %v651 = vadd.f32 %v564, %v648
          %s652 = scalar_lea.vmem %s1, 96
          %v653 = vld [vmem:[%s652] sm:$0xff]
          %v654 = vld [vmem:[%s652 + $0x8] sm:$0xff]
          %s655 = scalar_lea.vmem %s1, 112
          %v656 = vld [vmem:[%s655] sm:$0xff]
          %v657 = vld [vmem:[%s655 + $0x8] sm:$0xff]
          %658 = vmatpush.msra.mxu0 0.0
          %659 = vmatpush.msra.mxu0 0.0
          %660 = vmatpush.msra.mxu0 0.0
          %661 = vmatpush.msra.mxu0 0.0
          %662 = vmatpush.msra.mxu0 0.0
          %663 = vmatpush.msra.mxu0 0.0
          %664 = vmatpush.msra.mxu0 0.0
          %665 = vmatpush.msra.mxu0 0.0
          %666 = vmatpush.msra.mxu0 0.0
          %667 = vmatpush.msra.mxu0 0.0
          %668 = vmatpush.msra.mxu0 0.0
          %669 = vmatpush.msra.mxu0 0.0
          %670 = vmatpush.msra.mxu0 0.0
          %671 = vmatpush.msra.mxu0 0.0
          %672 = vmatpush.msra.mxu0 %v657
          %673 = vmatpush.msra.mxu0 %v656
          %674 = vmatmul.f32.gmra.mxu0 %v394
          %v675 = vpop.f32.mrf.mxu0
          %v676 = vadd.f32 0.0, %v675
          %677 = vmatmul.f32.gmra.mxu0 %v397
          %v678 = vpop.f32.mrf.mxu0
          %v679 = vadd.f32 0.0, %v678
          %680 = vdwg.mxu0
          %681 = vmatpush.msra.mxu0 0.0
          %682 = vmatpush.msra.mxu0 0.0
          %683 = vmatpush.msra.mxu0 0.0
          %684 = vmatpush.msra.mxu0 0.0
          %685 = vmatpush.msra.mxu0 0.0
          %686 = vmatpush.msra.mxu0 0.0
          %687 = vmatpush.msra.mxu0 0.0
          %688 = vmatpush.msra.mxu0 0.0
          %689 = vmatpush.msra.mxu0 0.0
          %690 = vmatpush.msra.mxu0 0.0
          %691 = vmatpush.msra.mxu0 0.0
          %692 = vmatpush.msra.mxu0 0.0
          %693 = vmatpush.msra.mxu0 0.0
          %694 = vmatpush.msra.mxu0 0.0
          %695 = vmatpush.msra.mxu0 %v654
          %696 = vmatpush.msra.mxu0 %v653
          %697 = vmatmul.f32.gmra.mxu0 %v423
          %v698 = vpop.f32.mrf.mxu0
          %v699 = vadd.f32 %v676, %v698
          %700 = vmatmul.f32.gmra.mxu0 %v426
          %v701 = vpop.f32.mrf.mxu0
          %v702 = vadd.f32 %v679, %v701
          %703 = vdwg.mxu0
          %s704 = scalar_lea.vmem %s2, 48
          %v705 = vld [vmem:[%s704] sm:$0xff]
          %v706 = vld [vmem:[%s704 + $0x8] sm:$0xff]
          %v708 = vsel %vm243, %v705, 0
          %v711 = vsel %vm243, %v706, 0
          %713 = vmatpush.msra.mxu0 0.0
          %714 = vmatpush.msra.mxu0 0.0
          %715 = vmatpush.msra.mxu0 0.0
          %716 = vmatpush.msra.mxu0 0.0
          %717 = vmatpush.msra.mxu0 0.0
          %718 = vmatpush.msra.mxu0 0.0
          %719 = vmatpush.msra.mxu0 0.0
          %720 = vmatpush.msra.mxu0 0.0
          %721 = vmatpush.msra.mxu0 0.0
          %722 = vmatpush.msra.mxu0 0.0
          %723 = vmatpush.msra.mxu0 0.0
          %724 = vmatpush.msra.mxu0 0.0
          %725 = vmatpush.msra.mxu0 0.0
          %726 = vmatpush.msra.mxu0 0.0
          %727 = vmatpush.msra.mxu0 %v702
          %728 = vmatpush.msra.mxu0 %v699
          %729 = vmatmul.f32.gmra.mxu0 %v708
          %v730 = vpop.f32.mrf.mxu0
          %v731 = vadd.f32 0.0, %v730
          %732 = vmatmul.f32.gmra.mxu0 %v711
          %v733 = vpop.f32.mrf.mxu0
          %v734 = vadd.f32 0.0, %v733
          %735 = vdwg.mxu0
          %v736 = vadd.f32 %v650, %v731
          %v737 = vadd.f32 %v651, %v734
          %s738 = scalar_lea.vmem %s1, 128
          %v739 = vld [vmem:[%s738] sm:$0xff]
          %v740 = vld [vmem:[%s738 + $0x8] sm:$0xff]
          %s741 = scalar_lea.vmem %s1, 144
          %v742 = vld [vmem:[%s741] sm:$0xff]
          %v743 = vld [vmem:[%s741 + $0x8] sm:$0xff]
          %744 = vmatpush.msra.mxu0 0.0
          %745 = vmatpush.msra.mxu0 0.0
          %746 = vmatpush.msra.mxu0 0.0
          %747 = vmatpush.msra.mxu0 0.0
          %748 = vmatpush.msra.mxu0 0.0
          %749 = vmatpush.msra.mxu0 0.0
          %750 = vmatpush.msra.mxu0 0.0
          %751 = vmatpush.msra.mxu0 0.0
          %752 = vmatpush.msra.mxu0 0.0
          %753 = vmatpush.msra.mxu0 0.0
          %754 = vmatpush.msra.mxu0 0.0
          %755 = vmatpush.msra.mxu0 0.0
          %756 = vmatpush.msra.mxu0 0.0
          %757 = vmatpush.msra.mxu0 0.0
          %758 = vmatpush.msra.mxu0 %v743
          %759 = vmatpush.msra.mxu0 %v742
          %760 = vmatmul.f32.gmra.mxu0 %v394
          %v761 = vpop.f32.mrf.mxu0
          %v762 = vadd.f32 0.0, %v761
          %763 = vmatmul.f32.gmra.mxu0 %v397
          %v764 = vpop.f32.mrf.mxu0
          %v765 = vadd.f32 0.0, %v764
          %766 = vdwg.mxu0
          %767 = vmatpush.msra.mxu0 0.0
          %768 = vmatpush.msra.mxu0 0.0
          %769 = vmatpush.msra.mxu0 0.0
          %770 = vmatpush.msra.mxu0 0.0
          %771 = vmatpush.msra.mxu0 0.0
          %772 = vmatpush.msra.mxu0 0.0
          %773 = vmatpush.msra.mxu0 0.0
          %774 = vmatpush.msra.mxu0 0.0
          %775 = vmatpush.msra.mxu0 0.0
          %776 = vmatpush.msra.mxu0 0.0
          %777 = vmatpush.msra.mxu0 0.0
          %778 = vmatpush.msra.mxu0 0.0
          %779 = vmatpush.msra.mxu0 0.0
          %780 = vmatpush.msra.mxu0 0.0
          %781 = vmatpush.msra.mxu0 %v740
          %782 = vmatpush.msra.mxu0 %v739
          %783 = vmatmul.f32.gmra.mxu0 %v423
          %v784 = vpop.f32.mrf.mxu0
          %v785 = vadd.f32 %v762, %v784
          %786 = vmatmul.f32.gmra.mxu0 %v426
          %v787 = vpop.f32.mrf.mxu0
          %v788 = vadd.f32 %v765, %v787
          %789 = vdwg.mxu0
          %s790 = scalar_lea.vmem %s2, 64
          %v791 = vld [vmem:[%s790] sm:$0xff]
          %v792 = vld [vmem:[%s790 + $0x8] sm:$0xff]
          %v794 = vsel %vm243, %v791, 0
          %v797 = vsel %vm243, %v792, 0
          %799 = vmatpush.msra.mxu0 0.0
          %800 = vmatpush.msra.mxu0 0.0
          %801 = vmatpush.msra.mxu0 0.0
          %802 = vmatpush.msra.mxu0 0.0
          %803 = vmatpush.msra.mxu0 0.0
          %804 = vmatpush.msra.mxu0 0.0
          %805 = vmatpush.msra.mxu0 0.0
          %806 = vmatpush.msra.mxu0 0.0
          %807 = vmatpush.msra.mxu0 0.0
          %808 = vmatpush.msra.mxu0 0.0
          %809 = vmatpush.msra.mxu0 0.0
          %810 = vmatpush.msra.mxu0 0.0
          %811 = vmatpush.msra.mxu0 0.0
          %812 = vmatpush.msra.mxu0 0.0
          %813 = vmatpush.msra.mxu0 %v788
          %814 = vmatpush.msra.mxu0 %v785
          %815 = vmatmul.f32.gmra.mxu0 %v794
          %v816 = vpop.f32.mrf.mxu0
          %v817 = vadd.f32 0.0, %v816
          %818 = vmatmul.f32.gmra.mxu0 %v797
          %v819 = vpop.f32.mrf.mxu0
          %v820 = vadd.f32 0.0, %v819
          %821 = vdwg.mxu0
          %v822 = vadd.f32 %v736, %v817
          %v823 = vadd.f32 %v737, %v820
          %s824 = scalar_lea.vmem %s1, 160
          %v825 = vld [vmem:[%s824] sm:$0xff]
          %v826 = vld [vmem:[%s824 + $0x8] sm:$0xff]
          %s827 = scalar_lea.vmem %s1, 176
          %v828 = vld [vmem:[%s827] sm:$0xff]
          %v829 = vld [vmem:[%s827 + $0x8] sm:$0xff]
          %830 = vmatpush.msra.mxu0 0.0
          %831 = vmatpush.msra.mxu0 0.0
          %832 = vmatpush.msra.mxu0 0.0
          %833 = vmatpush.msra.mxu0 0.0
          %834 = vmatpush.msra.mxu0 0.0
          %835 = vmatpush.msra.mxu0 0.0
          %836 = vmatpush.msra.mxu0 0.0
          %837 = vmatpush.msra.mxu0 0.0
          %838 = vmatpush.msra.mxu0 0.0
          %839 = vmatpush.msra.mxu0 0.0
          %840 = vmatpush.msra.mxu0 0.0
          %841 = vmatpush.msra.mxu0 0.0
          %842 = vmatpush.msra.mxu0 0.0
          %843 = vmatpush.msra.mxu0 0.0
          %844 = vmatpush.msra.mxu0 %v829
          %845 = vmatpush.msra.mxu0 %v828
          %846 = vmatmul.f32.gmra.mxu0 %v394
          %v847 = vpop.f32.mrf.mxu0
          %v848 = vadd.f32 0.0, %v847
          %849 = vmatmul.f32.gmra.mxu0 %v397
          %v850 = vpop.f32.mrf.mxu0
          %v851 = vadd.f32 0.0, %v850
          %852 = vdwg.mxu0
          %853 = vmatpush.msra.mxu0 0.0
          %854 = vmatpush.msra.mxu0 0.0
          %855 = vmatpush.msra.mxu0 0.0
          %856 = vmatpush.msra.mxu0 0.0
          %857 = vmatpush.msra.mxu0 0.0
          %858 = vmatpush.msra.mxu0 0.0
          %859 = vmatpush.msra.mxu0 0.0
          %860 = vmatpush.msra.mxu0 0.0
          %861 = vmatpush.msra.mxu0 0.0
          %862 = vmatpush.msra.mxu0 0.0
          %863 = vmatpush.msra.mxu0 0.0
          %864 = vmatpush.msra.mxu0 0.0
          %865 = vmatpush.msra.mxu0 0.0
          %866 = vmatpush.msra.mxu0 0.0
          %867 = vmatpush.msra.mxu0 %v826
          %868 = vmatpush.msra.mxu0 %v825
          %869 = vmatmul.f32.gmra.mxu0 %v423
          %v870 = vpop.f32.mrf.mxu0
          %v871 = vadd.f32 %v848, %v870
          %872 = vmatmul.f32.gmra.mxu0 %v426
          %v873 = vpop.f32.mrf.mxu0
          %v874 = vadd.f32 %v851, %v873
          %875 = vdwg.mxu0
          %s876 = scalar_lea.vmem %s2, 80
          %v877 = vld [vmem:[%s876] sm:$0xff]
          %v878 = vld [vmem:[%s876 + $0x8] sm:$0xff]
          %v880 = vsel %vm243, %v877, 0
          %v883 = vsel %vm243, %v878, 0
          %885 = vmatpush.msra.mxu0 0.0
          %886 = vmatpush.msra.mxu0 0.0
          %887 = vmatpush.msra.mxu0 0.0
          %888 = vmatpush.msra.mxu0 0.0
          %889 = vmatpush.msra.mxu0 0.0
          %890 = vmatpush.msra.mxu0 0.0
          %891 = vmatpush.msra.mxu0 0.0
          %892 = vmatpush.msra.mxu0 0.0
          %893 = vmatpush.msra.mxu0 0.0
          %894 = vmatpush.msra.mxu0 0.0
          %895 = vmatpush.msra.mxu0 0.0
          %896 = vmatpush.msra.mxu0 0.0
          %897 = vmatpush.msra.mxu0 0.0
          %898 = vmatpush.msra.mxu0 0.0
          %899 = vmatpush.msra.mxu0 %v874
          %900 = vmatpush.msra.mxu0 %v871
          %901 = vmatmul.f32.gmra.mxu0 %v880
          %v902 = vpop.f32.mrf.mxu0
          %v903 = vadd.f32 0.0, %v902
          %904 = vmatmul.f32.gmra.mxu0 %v883
          %v905 = vpop.f32.mrf.mxu0
          %v906 = vadd.f32 0.0, %v905
          %907 = vdwg.mxu0
          %v908 = vadd.f32 %v822, %v903
          %v909 = vadd.f32 %v823, %v906
          %s910 = scalar_lea.vmem %s1, 192
          %v911 = vld [vmem:[%s910] sm:$0xff]
          %v912 = vld [vmem:[%s910 + $0x8] sm:$0xff]
          %s913 = scalar_lea.vmem %s1, 208
          %v914 = vld [vmem:[%s913] sm:$0xff]
          %v915 = vld [vmem:[%s913 + $0x8] sm:$0xff]
          %916 = vmatpush.msra.mxu0 0.0
          %917 = vmatpush.msra.mxu0 0.0
          %918 = vmatpush.msra.mxu0 0.0
          %919 = vmatpush.msra.mxu0 0.0
          %920 = vmatpush.msra.mxu0 0.0
          %921 = vmatpush.msra.mxu0 0.0
          %922 = vmatpush.msra.mxu0 0.0
          %923 = vmatpush.msra.mxu0 0.0
          %924 = vmatpush.msra.mxu0 0.0
          %925 = vmatpush.msra.mxu0 0.0
          %926 = vmatpush.msra.mxu0 0.0
          %927 = vmatpush.msra.mxu0 0.0
          %928 = vmatpush.msra.mxu0 0.0
          %929 = vmatpush.msra.mxu0 0.0
          %930 = vmatpush.msra.mxu0 %v915
          %931 = vmatpush.msra.mxu0 %v914
          %932 = vmatmul.f32.gmra.mxu0 %v394
          %v933 = vpop.f32.mrf.mxu0
          %v934 = vadd.f32 0.0, %v933
          %935 = vmatmul.f32.gmra.mxu0 %v397
          %v936 = vpop.f32.mrf.mxu0
          %v937 = vadd.f32 0.0, %v936
          %938 = vdwg.mxu0
          %939 = vmatpush.msra.mxu0 0.0
          %940 = vmatpush.msra.mxu0 0.0
          %941 = vmatpush.msra.mxu0 0.0
          %942 = vmatpush.msra.mxu0 0.0
          %943 = vmatpush.msra.mxu0 0.0
          %944 = vmatpush.msra.mxu0 0.0
          %945 = vmatpush.msra.mxu0 0.0
          %946 = vmatpush.msra.mxu0 0.0
          %947 = vmatpush.msra.mxu0 0.0
          %948 = vmatpush.msra.mxu0 0.0
          %949 = vmatpush.msra.mxu0 0.0
          %950 = vmatpush.msra.mxu0 0.0
          %951 = vmatpush.msra.mxu0 0.0
          %952 = vmatpush.msra.mxu0 0.0
          %953 = vmatpush.msra.mxu0 %v912
          %954 = vmatpush.msra.mxu0 %v911
          %955 = vmatmul.f32.gmra.mxu0 %v423
          %v956 = vpop.f32.mrf.mxu0
          %v957 = vadd.f32 %v934, %v956
          %958 = vmatmul.f32.gmra.mxu0 %v426
          %v959 = vpop.f32.mrf.mxu0
          %v960 = vadd.f32 %v937, %v959
          %961 = vdwg.mxu0
          %s962 = scalar_lea.vmem %s2, 96
          %v963 = vld [vmem:[%s962] sm:$0xff]
          %v964 = vld [vmem:[%s962 + $0x8] sm:$0xff]
          %v966 = vsel %vm243, %v963, 0
          %v969 = vsel %vm243, %v964, 0
          %971 = vmatpush.msra.mxu0 0.0
          %972 = vmatpush.msra.mxu0 0.0
          %973 = vmatpush.msra.mxu0 0.0
          %974 = vmatpush.msra.mxu0 0.0
          %975 = vmatpush.msra.mxu0 0.0
          %976 = vmatpush.msra.mxu0 0.0
          %977 = vmatpush.msra.mxu0 0.0
          %978 = vmatpush.msra.mxu0 0.0
          %979 = vmatpush.msra.mxu0 0.0
          %980 = vmatpush.msra.mxu0 0.0
          %981 = vmatpush.msra.mxu0 0.0
          %982 = vmatpush.msra.mxu0 0.0
          %983 = vmatpush.msra.mxu0 0.0
          %984 = vmatpush.msra.mxu0 0.0
          %985 = vmatpush.msra.mxu0 %v960
          %986 = vmatpush.msra.mxu0 %v957
          %987 = vmatmul.f32.gmra.mxu0 %v966
          %v988 = vpop.f32.mrf.mxu0
          %v989 = vadd.f32 0.0, %v988
          %990 = vmatmul.f32.gmra.mxu0 %v969
          %v991 = vpop.f32.mrf.mxu0
          %v992 = vadd.f32 0.0, %v991
          %993 = vdwg.mxu0
          %v994 = vadd.f32 %v908, %v989
          %v995 = vadd.f32 %v909, %v992
          %v996 = vsub.f32 0.0, %v994
          %v997 = vsub.f32 0.0, %v995
          %v998 = vmul.f32 %v996, 1.442695
          %v999 = vpow.pop %v998
          %v1000 = vmul.f32 %v997, 1.442695
          %v1001 = vpow.pop %v1000
          %v1002 = vadd.f32 %v999, 1.0
          %v1003 = vadd.f32 %v1001, 1.0
          %v1004 = vrcp.pop %v1002
          %v1005 = vmul.f32 %v1002, %v1004
          %v1006 = vsub.f32 1.0, %v1005
          %v1007 = vmul.f32 %v1004, %v1006
          %v1008 = vadd.f32 %v1004, %v1007
          %vm1009 = vweird.f32 %v1002
          %vm1010 = vweird.f32 %v1004
          %vm1011 = vmor %vm1009, %vm1010
          %v1012 = vsel %vm1011, %v1004, %v1008
          %v1013 = vand.u32 2147483647, %v1002
          %vm1014 = vcmp.eq.f32.partialorder %v1013, 8.507059e+37
          %v1015 = vand.u32 %v1002, 2147483648
          %v1016 = vor.u32 1.1754944e-38, %v1015
          %v1017 = vsel %vm1014, %v1016, %v1012
          %v1018 = vrcp.pop %v1003
          %v1019 = vmul.f32 %v1003, %v1018
          %v1020 = vsub.f32 1.0, %v1019
          %v1021 = vmul.f32 %v1018, %v1020
          %v1022 = vadd.f32 %v1018, %v1021
          %vm1023 = vweird.f32 %v1003
          %vm1024 = vweird.f32 %v1018
          %vm1025 = vmor %vm1023, %vm1024
          %v1026 = vsel %vm1025, %v1018, %v1022
          %v1027 = vand.u32 2147483647, %v1003
          %vm1028 = vcmp.eq.f32.partialorder %v1027, 8.507059e+37
          %v1029 = vand.u32 %v1003, 2147483648
          %v1030 = vor.u32 1.1754944e-38, %v1029
          %v1031 = vsel %vm1028, %v1030, %v1026
          %1032 = vst.msk [vmem:[%s188] sm:$0xff] %vm243, %v1017
          %1033 = vst.msk [vmem:[%s188 + $0x8] sm:$0xff] %vm243, %v1031
        $region40: #{tpu_custom_call.1} parent=31 // pred_fallthru
          _
        %s1034 = sand.u32 %s107, 1
        %s1035 = scalar_lea.sflag [#allocation5], %s1034
        %s1036 = sand.u32 %s107, 1
        %s1037 = smul.addr %s1036, 16
        %s1038 = scalar_lea.vmem [#allocation4], %s1037
        // Predicated region
        $region41: #{tpu_custom_call.1} parent=31 // pred_check
          %p1039 = pneg %p117
        $region42: #{tpu_custom_call.1} parent=31 // pred_check_branch
          %1041 = sbr.rel (%p1039) target = $region44
        $region43: #{tpu_custom_call.1} parent=31 // pred_region
          %1043 = vsyncadd %s1035, 0
          %s1044 = smul.addr %s21, 2
          %s1045 = smul.addr %s1044, 8
          %s1046 = scalar_lea.hbm %s3, %s1045
          %s1047 = sshll.u32 %s1038, 4
          %s1048 = int_to_ptr.vmem [resolvable:$true] %s1047
          %s1049 = sshll.u32 %s1046, 4
          %s1050 = int_to_ptr.hbm [resolvable:$true] %s1049
          %1055 = dma.vmem_to_hbm [thread:$0]  %s1048, 256, %s1050, %s1035, 128, 128, 8
        $region44: #{tpu_custom_call.1} parent=31 // pred_fallthru
          _
      $region32: #{tpu_custom_call.1} parent=5 // pred_fallthru
        _
      %p1056 = scmp.le.s32.totalorder 2, %s12
      // Predicated region
      $region45: #{tpu_custom_call.1} parent=5 // pred_check
        %p1057 = pneg %p1056
      $region46: #{tpu_custom_call.1} parent=5 // pred_check_branch
        %1059 = sbr.rel (%p1057) target = $region48
      $region47: #{tpu_custom_call.1} parent=5 // pred_region
        %s1060 = ssub.s32 %s12, 2
        // Predicated region
        $region49: #{tpu_custom_call.1} parent=47 // pred_check
          %p1061 = pneg %p123
        $region50: #{tpu_custom_call.1} parent=47 // pred_check_branch
          %1063 = sbr.rel (%p1061) target = $region52
        $region51: #{tpu_custom_call.1} parent=47 // pred_region
          %s1064 = sand.u32 %s108, 1
          %s1065 = scalar_lea.sflag [#allocation5], %s1064
          %s1066 = sand.u32 %s108, 1
          %s1067 = smul.addr %s1066, 16
          %s1068 = scalar_lea.vmem [#allocation4], %s1067
          %1070 = dma.done %s1065, 256
        $region52: #{tpu_custom_call.1} parent=47 // pred_fallthru
          _
      $region48: #{tpu_custom_call.1} parent=5 // pred_fallthru
        _
    $region6: #{tpu_custom_call.1} parent=1 // loop_footer
      %s16 = sadd.s32 1, %s12
    $region7: #{tpu_custom_call.1} parent=1 // loop_footer_branch
      %11 = sbr.rel target = $region3
    $region8: #{tpu_custom_call.1} parent=1 // loop_exit
      _
    %1071 = vsyncpa [#allocation5], 1
    %s1072 = scalar_lea.sflag [#allocation5], 1
    %1073 = vsyncpa %s1072, 1

</llo_original>
